<compile_context>
chip_gen: v5e
topology: v5e:2x2
jax: 0.10.0
libtpu: 0.0.40
codegen_flags: <defaults>
</compile_context>

<pallas_src>
import math

import jax
import jax.numpy as jnp
import numpy as np
from jax.experimental import pallas as pl
from jax.experimental.pallas import tpu as pltpu


# conv config (the PyTorch module passes these via **kwargs)
KH = KW = 3
STRIDE = 1
PAD = 1
BN_EPS = 1e-5
LEAKY_SLOPE = 0.01       # PyTorch nn.LeakyReLU default negative_slope

LANE = 128               # TPU lane width
TM = 256                 # row tile (multiple of 8; multiple of 256 for v6e/v7x MXU)


def _round_up(x, m):
    return ((x + m - 1) // m) * m


# ----------------------------------------------------------------------------
# Kernel 1: im2col matmul (bf16 in, f32 acc) + per-tile BN partial statistics.
# ----------------------------------------------------------------------------
def _conv_stats_kernel(x_ref, w_ref, conv_ref, stats_ref):
    """
    x_ref:     (TM, K)   bf16 im2col rows for this tile (K = KH*KW*Cin)
    w_ref:     (K, CP)   bf16 flattened conv weight, Cout padded to CP=128
    conv_ref:  (TM, CP)  f32 conv output tile (lane-dense)
    stats_ref: (8, CP)   f32 row0 = per-channel sum, row1 = sum of squares
    """
    acc = jnp.dot(x_ref[...], w_ref[...], preferred_element_type=jnp.float32)
    conv_ref[...] = acc

    cp = acc.shape[1]
    s = jnp.sum(acc, axis=0, keepdims=True)                   # (1, CP)
    sq = jnp.sum(acc * acc, axis=0, keepdims=True)            # (1, CP)
    stats_ref[...] = jnp.concatenate(
        [s, sq, jnp.zeros((6, cp), jnp.float32)], axis=0)


# ----------------------------------------------------------------------------
# Kernel 2: fused BN affine + LeakyReLU (single VPU pass, lane-dense store).
# ----------------------------------------------------------------------------
def _bn_act_kernel(conv_ref, a_ref, b_ref, o_ref):
    """
    conv_ref: (TM, CP) f32 ; a_ref/b_ref: (1, CP) f32 ; o_ref: (TM, CP) f32
    y = conv * a + b ; out = leaky_relu(y)
    """
    y = conv_ref[...] * a_ref[...] + b_ref[...]
    o_ref[...] = jnp.where(y >= 0, y, LEAKY_SLOPE * y).astype(o_ref.dtype)


# ----------------------------------------------------------------------------
# Parameter init: kernel-friendly layouts (flattened, lane-padded, bf16) are
# prepared ONCE here, not per call.
# ----------------------------------------------------------------------------
def init_params(key, in_channels, out_channels):
    kw_, kg, kb = jax.random.split(key, 3)
    fan_in = in_channels * KH * KW
    bound = 1.0 / math.sqrt(fan_in)                # PyTorch conv default init
    # PyTorch layout (Cout, Cin, KH, KW) -- kept for the reference check
    w_oihw = jax.random.uniform(kw_, (out_channels, in_channels, KH, KW),
                                jnp.float32, -bound, bound)
    # Flattened im2col weight (KH*KW*Cin, Cout), then pad Cout -> 128 lanes,
    # then cast to bf16 for the MXU.
    cp = _round_up(out_channels, LANE)
    w_flat = jnp.transpose(w_oihw, (2, 3, 1, 0)).reshape(
        KH * KW * in_channels, out_channels)
    w_flat = jnp.pad(w_flat, ((0, 0), (0, cp - out_channels))).astype(jnp.bfloat16)

    gamma = jax.random.uniform(kg, (out_channels,), jnp.float32, 0.5, 1.5)
    beta = jax.random.uniform(kb, (out_channels,), jnp.float32, -0.5, 0.5)
    gamma_pad = jnp.pad(gamma, (0, cp - out_channels))
    beta_pad = jnp.pad(beta, (0, cp - out_channels))

    return dict(w_oihw=w_oihw, w_flat=w_flat,
                gamma=gamma, beta=beta,
                gamma_pad=gamma_pad, beta_pad=beta_pad)


# ----------------------------------------------------------------------------
# Forward wrapper: im2col build + two pipelined pallas_calls + tiny JAX stat
# reduction between them.
# ----------------------------------------------------------------------------
def cnnblock_forward(x_nchw, params):
    """x: (N, Cin, H, W) f32 -> (N, Cout, H, W) f32  (k=3, stride=1, pad=1)."""
    N, Cin, H, W = x_nchw.shape
    Cout = params["gamma"].shape[0]
    K, CP = params["w_flat"].shape                      # K = 9*Cin, CP = 128

    # ---- layout glue: NHWC + halo pad + im2col (rows, 9*Cin), bf16 ----------
    x_nhwc = jnp.transpose(x_nchw, (0, 2, 3, 1))
    x_pad = jnp.pad(x_nhwc, ((0, 0), (PAD, PAD), (PAD, PAD), (0, 0)))
    taps = [x_pad[:, kh:kh + H, kw_:kw_ + W, :]
            for kh in range(KH) for kw_ in range(KW)]
    im2col = jnp.concatenate(taps, axis=-1).reshape(N * H * W, K)
    im2col = im2col.astype(jnp.bfloat16)

    nhw = N * H * W
    tm = min(TM, _round_up(nhw, 8))
    rows_pad = _round_up(nhw, tm)
    if rows_pad != nhw:                                  # zero rows: no effect on stats
        im2col = jnp.pad(im2col, ((0, rows_pad - nhw), (0, 0)))
    num_tiles = rows_pad // tm

    # NOTE: per-tile VMEM use is tiny here; raise vmem_limit_bytes in
    # CompilerParams when scaling tm / K (scoped default is 16 MiB on v5e).
    cparams = pltpu.CompilerParams(dimension_semantics=("parallel",))

    # ---- pass 1: conv matmul + per-tile BN partial sums ---------------------
    conv_out, stats = pl.pallas_call(
        _conv_stats_kernel,
        out_shape=(jax.ShapeDtypeStruct((rows_pad, CP), jnp.float32),
                   jax.ShapeDtypeStruct((num_tiles * 8, CP), jnp.float32)),
        grid_spec=pltpu.PrefetchScalarGridSpec(
            num_scalar_prefetch=0,
            grid=(num_tiles,),
            in_specs=[
                pl.BlockSpec((tm, K), lambda i: (i, 0)),
                pl.BlockSpec((K, CP), lambda i: (0, 0)),
            ],
            out_specs=(
                pl.BlockSpec((tm, CP), lambda i: (i, 0)),
                pl.BlockSpec((8, CP), lambda i: (i, 0)),
            ),
        ),
        compiler_params=cparams,
    )(im2col, params["w_flat"])

    # ---- tiny per-channel stat reduction + BN affine coefficients (plain JAX)
    stats = stats.reshape(num_tiles, 8, CP)
    sum_c = jnp.sum(stats[:, 0, :], axis=0)              # (CP,)
    sumsq = jnp.sum(stats[:, 1, :], axis=0)              # (CP,)
    inv_n = 1.0 / nhw                                     # padded rows are all-zero
    mean = sum_c * inv_n
    var = jnp.maximum(sumsq * inv_n - mean * mean, 0.0)   # biased (train-mode BN)
    inv_std = jax.lax.rsqrt(var + BN_EPS)
    a = (params["gamma_pad"] * inv_std).reshape(1, CP)
    b = (params["beta_pad"] - mean * params["gamma_pad"] * inv_std).reshape(1, CP)

    # ---- pass 2: fused affine + LeakyReLU ------------------------------------
    out2d = pl.pallas_call(
        _bn_act_kernel,
        out_shape=jax.ShapeDtypeStruct((rows_pad, CP), jnp.float32),
        grid_spec=pltpu.PrefetchScalarGridSpec(
            num_scalar_prefetch=0,
            grid=(num_tiles,),
            in_specs=[
                pl.BlockSpec((tm, CP), lambda i: (i, 0)),
                pl.BlockSpec((1, CP), lambda i: (0, 0)),
                pl.BlockSpec((1, CP), lambda i: (0, 0)),
            ],
            out_specs=pl.BlockSpec((tm, CP), lambda i: (i, 0)),
        ),
        compiler_params=cparams,
    )(conv_out, a, b)

    # slice off row / channel padding and restore PyTorch NCHW layout
    out = out2d[:nhw, :Cout].reshape(N, H, W, Cout)
    return jnp.transpose(out, (0, 3, 1, 2))


# ----------------------------------------------------------------------------
# NumPy float64 reference of the PyTorch CNNBlock forward (train-mode BN).
# ----------------------------------------------------------------------------
def _reference_forward(x, w_oihw, gamma, beta):
    x = np.asarray(x, np.float64)
    w = np.asarray(w_oihw, np.float64)
    N, Cin, H, W = x.shape
    xp = np.pad(x, ((0, 0), (0, 0), (PAD, PAD), (PAD, PAD)))
    Cout = w.shape[0]
    y = np.zeros((N, Cout, H, W), np.float64)
    for kh in range(KH):
        for kw_ in range(KW):
            patch = xp[:, :, kh:kh + H, kw_:kw_ + W]            # (N,Cin,H,W)
            y += np.einsum("nchw,oc->nohw", patch, w[:, :, kh, kw_])
    mean = y.mean(axis=(0, 2, 3), keepdims=True)
    var = y.var(axis=(0, 2, 3), keepdims=True)                  # biased
    yn = (y - mean) / np.sqrt(var + BN_EPS)
    yn = (yn * np.asarray(gamma, np.float64).reshape(1, -1, 1, 1)
          + np.asarray(beta, np.float64).reshape(1, -1, 1, 1))
    return np.where(yn >= 0, yn, LEAKY_SLOPE * yn)


if __name__ == "__main__":
    key = jax.random.PRNGKey(0)
    k_x, k_p = jax.random.split(key)

    # Small shapes consistent with the module (`i == 16` channel branch).
    N, Cin, Cout, H, W = 2, 16, 32, 16, 16
    x = jax.random.normal(k_x, (N, Cin, H, W), dtype=jnp.float32)
    params = init_params(k_p, Cin, Cout)

    fwd = jax.jit(cnnblock_forward)
    out = fwd(x, params)
    jax.block_until_ready(out)
    assert out.shape == (N, Cout, H, W), out.shape

    ref = _reference_forward(x, params["w_oihw"], params["gamma"], params["beta"])
    max_err = float(np.max(np.abs(np.asarray(out, np.float64) - ref)))
    # bf16 matmul operands -> slightly relaxed tolerance vs the f64 reference.
    assert np.allclose(np.asarray(out), ref, atol=3e-2, rtol=3e-2), max_err

    print("KERNEL_OK")
</pallas_src>

<mosaic_0001>
module attributes {stable_mosaic.version = 11 : i64} {
  func.func @_conv_stats_kernel(%arg0: i32, %arg1: memref<256x144xbf16, #tpu.memory_space<vmem>>, %arg2: memref<144x128xbf16, #tpu.memory_space<vmem>>, %arg3: memref<256x128xf32, #tpu.memory_space<vmem>>, %arg4: memref<8x128xf32, #tpu.memory_space<vmem>>) attributes {dimension_semantics = [#tpu.dimension_semantics<parallel>], iteration_bounds = array<i64: 2>, scalar_prefetch = 0 : i64, scratch_operands = 0 : i64, tpu.core_type = #tpu.core_type<tc>, window_params = [{transform_indices = @transform_0, window_bounds = array<i64: 256, 144>}, {pipeline_mode = #tpu.pipeline_mode<synchronous>, transform_indices = @transform_1, window_bounds = array<i64: 144, 128>}, {transform_indices = @transform_2, window_bounds = array<i64: 256, 128>}, {transform_indices = @transform_3, window_bounds = array<i64: 8, 128>}]} {
    %c0 = arith.constant 0 : index
    %c0_0 = arith.constant 0 : index
    %0 = vector.load %arg1[%c0, %c0_0] : memref<256x144xbf16, #tpu.memory_space<vmem>>, vector<256x144xbf16>
    %c0_1 = arith.constant 0 : index
    %c0_2 = arith.constant 0 : index
    %1 = vector.load %arg2[%c0_1, %c0_2] : memref<144x128xbf16, #tpu.memory_space<vmem>>, vector<144x128xbf16>
    %cst = arith.constant dense<0.000000e+00> : vector<256x128xf32>
    %2 = tpu.matmul %0, %1, %cst {dimension_numbers = #tpu.dot_dimension_numbers<[1], [0], [0], [1], [0, 0, 1, 1], [], []>} : vector<256x144xbf16>, vector<144x128xbf16>, vector<256x128xf32> -> vector<256x128xf32>
    %c0_3 = arith.constant 0 : index
    %c0_4 = arith.constant 0 : index
    %3 = vector.load %arg3[%c0_3, %c0_4] : memref<256x128xf32, #tpu.memory_space<vmem>>, vector<256x128xf32>
    tpu.vector_store %arg3[%c0_3, %c0_4], %2 {strides = array<i32>} : memref<256x128xf32, #tpu.memory_space<vmem>>, vector<256x128xf32>,
    %cst_5 = arith.constant dense<0.000000e+00> : vector<128xf32>
    %4 = vector.multi_reduction <add>, %2, %cst_5 [0] : vector<256x128xf32> to vector<128xf32>
    %5 = vector.shape_cast %4 : vector<128xf32> to vector<1x128xf32>
    %6 = arith.mulf %2, %2 : vector<256x128xf32>
    %cst_6 = arith.constant dense<0.000000e+00> : vector<128xf32>
    %7 = vector.multi_reduction <add>, %6, %cst_6 [0] : vector<256x128xf32> to vector<128xf32>
    %8 = vector.shape_cast %7 : vector<128xf32> to vector<1x128xf32>
    %cst_7 = arith.constant 0.000000e+00 : f32
    %9 = vector.broadcast %cst_7 : f32 to vector<6x128xf32>
    %10 = tpu.concatenate %5, %8, %9 in 0 : vector<1x128xf32>, vector<1x128xf32>, vector<6x128xf32> -> vector<8x128xf32>
    %c0_8 = arith.constant 0 : index
    %c0_9 = arith.constant 0 : index
    %11 = vector.load %arg4[%c0_8, %c0_9] : memref<8x128xf32, #tpu.memory_space<vmem>>, vector<8x128xf32>
    tpu.vector_store %arg4[%c0_8, %c0_9], %10 {strides = array<i32>} : memref<8x128xf32, #tpu.memory_space<vmem>>, vector<8x128xf32>,
    return
  }
  func.func @transform_0(%arg0: i32) -> (i32, i32) {
    %c0_i32 = arith.constant 0 : i32
    %c0_i32_0 = arith.constant 0 : i32
    return %arg0, %c0_i32 : i32, i32
  }
  func.func @transform_1(%arg0: i32) -> (i32, i32) {
    %c0_i32 = arith.constant 0 : i32
    %c0_i32_0 = arith.constant 0 : i32
    %c0_i32_1 = arith.constant 0 : i32
    return %c0_i32, %c0_i32_0 : i32, i32
  }
  func.func @transform_2(%arg0: i32) -> (i32, i32) {
    %c0_i32 = arith.constant 0 : i32
    %c0_i32_0 = arith.constant 0 : i32
    return %arg0, %c0_i32 : i32, i32
  }
  func.func @transform_3(%arg0: i32) -> (i32, i32) {
    %c0_i32 = arith.constant 0 : i32
    %c0_i32_0 = arith.constant 0 : i32
    return %arg0, %c0_i32 : i32, i32
  }
}

module attributes {stable_mosaic.version = 11 : i64} {
  func.func @_bn_act_kernel(%arg0: i32, %arg1: memref<256x128xf32, #tpu.memory_space<vmem>>, %arg2: memref<1x128xf32, #tpu.memory_space<vmem>>, %arg3: memref<1x128xf32, #tpu.memory_space<vmem>>, %arg4: memref<256x128xf32, #tpu.memory_space<vmem>>) attributes {dimension_semantics = [#tpu.dimension_semantics<parallel>], iteration_bounds = array<i64: 2>, scalar_prefetch = 0 : i64, scratch_operands = 0 : i64, tpu.core_type = #tpu.core_type<tc>, window_params = [{transform_indices = @transform_0, window_bounds = array<i64: 256, 128>}, {pipeline_mode = #tpu.pipeline_mode<synchronous>, transform_indices = @transform_1, window_bounds = array<i64: 1, 128>}, {pipeline_mode = #tpu.pipeline_mode<synchronous>, transform_indices = @transform_2, window_bounds = array<i64: 1, 128>}, {transform_indices = @transform_3, window_bounds = array<i64: 256, 128>}]} {
    %c0 = arith.constant 0 : index
    %c0_0 = arith.constant 0 : index
    %0 = vector.load %arg1[%c0, %c0_0] : memref<256x128xf32, #tpu.memory_space<vmem>>, vector<256x128xf32>
    %c0_1 = arith.constant 0 : index
    %c0_2 = arith.constant 0 : index
    %1 = vector.load %arg2[%c0_1, %c0_2] : memref<1x128xf32, #tpu.memory_space<vmem>>, vector<1x128xf32>
    %2 = vector.broadcast %1 : vector<1x128xf32> to vector<256x128xf32>
    %3 = arith.mulf %0, %2 : vector<256x128xf32>
    %c0_3 = arith.constant 0 : index
    %c0_4 = arith.constant 0 : index
    %4 = vector.load %arg3[%c0_3, %c0_4] : memref<1x128xf32, #tpu.memory_space<vmem>>, vector<1x128xf32>
    %5 = vector.broadcast %4 : vector<1x128xf32> to vector<256x128xf32>
    %6 = arith.addf %3, %5 : vector<256x128xf32>
    %cst = arith.constant 0.000000e+00 : f32
    %7 = vector.broadcast %cst : f32 to vector<256x128xf32>
    %8 = arith.cmpf oge, %6, %7 : vector<256x128xf32>
    %cst_5 = arith.constant 0.00999999977 : f32
    %9 = vector.broadcast %cst_5 : f32 to vector<256x128xf32>
    %10 = arith.mulf %9, %6 : vector<256x128xf32>
    %11 = arith.select %8, %6, %10 : vector<256x128xi1>, vector<256x128xf32>
    %c0_6 = arith.constant 0 : index
    %c0_7 = arith.constant 0 : index
    %12 = vector.load %arg4[%c0_6, %c0_7] : memref<256x128xf32, #tpu.memory_space<vmem>>, vector<256x128xf32>
    tpu.vector_store %arg4[%c0_6, %c0_7], %11 {strides = array<i32>} : memref<256x128xf32, #tpu.memory_space<vmem>>, vector<256x128xf32>,
    return
  }
  func.func @transform_0(%arg0: i32) -> (i32, i32) {
    %c0_i32 = arith.constant 0 : i32
    %c0_i32_0 = arith.constant 0 : i32
    return %arg0, %c0_i32 : i32, i32
  }
  func.func @transform_1(%arg0: i32) -> (i32, i32) {
    %c0_i32 = arith.constant 0 : i32
    %c0_i32_0 = arith.constant 0 : i32
    %c0_i32_1 = arith.constant 0 : i32
    return %c0_i32, %c0_i32_0 : i32, i32
  }
  func.func @transform_2(%arg0: i32) -> (i32, i32) {
    %c0_i32 = arith.constant 0 : i32
    %c0_i32_0 = arith.constant 0 : i32
    %c0_i32_1 = arith.constant 0 : i32
    return %c0_i32, %c0_i32_0 : i32, i32
  }
  func.func @transform_3(%arg0: i32) -> (i32, i32) {
    %c0_i32 = arith.constant 0 : i32
    %c0_i32_0 = arith.constant 0 : i32
    return %arg0, %c0_i32 : i32, i32
  }
}

</mosaic_0001>

<llo_original>
// kernel: cnnblock_forward.3
$region0: #{cnnblock_forward.3}
  #allocation0 [shape = 'u32[]', space=smem, size = 0x4, offset = 0x4, fixed_abs, tag = 'smem constant byte address 0x4 - core index']
  #allocation1 [shape = 'u32[72,128]{1,0:T(1,128)}', space=vmem, size = 0x9000, scoped, tag = 'internal scratch']
  %s0 = inlined_call_operand.vmem [shape: f32[512,128], index: 0, kind: input, shape index: {}]
  %s1 = inlined_call_operand.vmem [shape: f32[1,128], index: 1, kind: input, shape index: {}]
  %s2 = inlined_call_operand.vmem [shape: f32[1,128], index: 2, kind: input, shape index: {}]
  %s3 = inlined_call_operand.hbm [shape: f32[512,128], index: 3, kind: output, shape index: {}]
  %s4 = sld [smem:[#allocation0]]
  $region45: #{cnnblock_forward.3} parent=0
    _
  %s6 = ssub.s32 1, %s4
  %s7 = scalar_select 0, %s6, %s4
  $region1: #{cnnblock_forward.3} parent=0
    #allocation2 [shape = 'u8[262144]{0}', space=vmem, size = 0x40000, scoped, tag = 'output window, operand 0']
    #allocation3 [shape = 's32[2]{0}', space=sflag, size = 0x8, scoped, tag = 'scoped memory for cnnblock_forward.3']
    %8 = vsyncpa [#allocation3], 0
    %s9 = scalar_lea.sflag [#allocation3], 1
    %10 = vsyncpa %s9, 0
    loop: start=0, step=1, limit=4
    $region2: #{cnnblock_forward.3} parent=1 // loop_pre_header
      _
    $region3: #{cnnblock_forward.3} parent=1 // loop_header
      %s12 = sphi 0, %s16
      %p13 = scmp.ge.s32.totalorder %s12, 4
      %s22 = sphi 0, %s24
      %s25 = sphi 0, %s22
      %s26 = sphi 0, %s25
      %s42 = sphi 0, %s26
      %s46 = sphi 0, %s46
      %s48 = sphi 0, %s46
      %s49 = sphi 0, %s48
      %s63 = sphi 0, %s49
      %s67 = sphi 0, %s67
      %s69 = sphi 0, %s67
      %s70 = sphi 0, %s69
      %s84 = sphi 0, %s70
      %s90 = sphi 0, %s92
      %s93 = sphi 0, %s90
      %s94 = sphi 0, %s93
      %s110 = sphi 0, %s94
    $region4: #{cnnblock_forward.3} parent=1 // loop_header_branch
      %15 = sbr.rel (%p13) target = $region8
    $region5: #{cnnblock_forward.3} parent=1 // loop_body
      %s17 = ssub.s32 %s12, 1
      %s18 = ssub.s32 %s12, 2
      %s19 = sadd.s32 %s12, 1
      %s20 = ssub.s32 %s12, %s19
      %p21 = scmp.eq.s32.totalorder %s20, 0
      %s23 = sadd.s32 %s22, 1
      %s24 = scalar_select %p21, %s22, %s23
      %p27 = pneg %p21
      %p28 = scmp.eq.s32.totalorder %s12, 1
      %p29 = por %p27, %p28
      %p30 = scmp.ne.s32.totalorder %s22, %s25
      %p31 = scmp.eq.s32.totalorder %s12, 0
      %p32 = por %p30, %p31
      %p33 = scmp.ne.s32.totalorder %s22, %s25
      %p34 = scmp.eq.s32.totalorder %s17, 1
      %p35 = por %p33, %p34
      %p36 = scmp.ne.s32.totalorder %s25, %s26
      %p37 = scmp.eq.s32.totalorder %s17, 0
      %p38 = por %p36, %p37
      %p39 = scmp.ne.s32.totalorder %s25, %s26
      %p40 = scmp.eq.s32.totalorder %s18, 1
      %p41 = por %p39, %p40
      %p43 = scmp.ne.s32.totalorder %s26, %s42
      %p44 = scmp.eq.s32.totalorder %s18, 0
      %p45 = por %p43, %p44
      %s47 = sadd.s32 %s46, 1
      %p50 = scmp.eq.s32.totalorder %s12, 1
      %p51 = scmp.ne.s32.totalorder %s46, %s48
      %p52 = scmp.eq.s32.totalorder %s12, 0
      %p53 = por %p51, %p52
      %p54 = scmp.ne.s32.totalorder %s46, %s48
      %p55 = scmp.eq.s32.totalorder %s17, 1
      %p56 = por %p54, %p55
      %p57 = scmp.ne.s32.totalorder %s48, %s49
      %p58 = scmp.eq.s32.totalorder %s17, 0
      %p59 = por %p57, %p58
      %p60 = scmp.ne.s32.totalorder %s48, %s49
      %p61 = scmp.eq.s32.totalorder %s18, 1
      %p62 = por %p60, %p61
      %p64 = scmp.ne.s32.totalorder %s49, %s63
      %p65 = scmp.eq.s32.totalorder %s18, 0
      %p66 = por %p64, %p65
      %s68 = sadd.s32 %s67, 1
      %p71 = scmp.eq.s32.totalorder %s12, 1
      %p72 = scmp.ne.s32.totalorder %s67, %s69
      %p73 = scmp.eq.s32.totalorder %s12, 0
      %p74 = por %p72, %p73
      %p75 = scmp.ne.s32.totalorder %s67, %s69
      %p76 = scmp.eq.s32.totalorder %s17, 1
      %p77 = por %p75, %p76
      %p78 = scmp.ne.s32.totalorder %s69, %s70
      %p79 = scmp.eq.s32.totalorder %s17, 0
      %p80 = por %p78, %p79
      %p81 = scmp.ne.s32.totalorder %s69, %s70
      %p82 = scmp.eq.s32.totalorder %s18, 1
      %p83 = por %p81, %p82
      %p85 = scmp.ne.s32.totalorder %s70, %s84
      %p86 = scmp.eq.s32.totalorder %s18, 0
      %p87 = por %p85, %p86
      %s88 = ssub.s32 %s12, %s19
      %p89 = scmp.eq.s32.totalorder %s88, 0
      %s91 = sadd.s32 %s90, 1
      %s92 = scalar_select %p89, %s90, %s91
      %p95 = pneg %p89
      %p96 = scmp.eq.s32.totalorder %s12, 1
      %p97 = por %p95, %p96
      %p98 = scmp.ne.s32.totalorder %s90, %s93
      %p99 = scmp.eq.s32.totalorder %s12, 0
      %p100 = por %p98, %p99
      %p101 = scmp.ne.s32.totalorder %s90, %s93
      %p102 = scmp.eq.s32.totalorder %s17, 1
      %p103 = por %p101, %p102
      %p104 = scmp.ne.s32.totalorder %s93, %s94
      %p105 = scmp.eq.s32.totalorder %s17, 0
      %p106 = por %p104, %p105
      %p107 = scmp.ne.s32.totalorder %s93, %s94
      %p108 = scmp.eq.s32.totalorder %s18, 1
      %p109 = por %p107, %p108
      %p111 = scmp.ne.s32.totalorder %s94, %s110
      %p112 = scmp.eq.s32.totalorder %s18, 0
      %p113 = por %p111, %p112
      %p114 = scmp.le.s32.totalorder 1, %s12
      %p115 = scmp.lt.s32.totalorder %s12, 3
      %p116 = pnand %p114, %p115
      %p117 = pneg %p116
      // Predicated region
      $region9: #{cnnblock_forward.3} parent=5 // pred_check
        _
      $region10: #{cnnblock_forward.3} parent=5 // pred_check_branch
        %119 = sbr.rel (%p116) target = $region12
      $region11: #{cnnblock_forward.3} parent=5 // pred_region
        %s120 = ssub.s32 %s12, 1
        // Predicated region
        $region13: #{cnnblock_forward.3} parent=11 // pred_check
          %p121 = pneg %p59
        $region14: #{cnnblock_forward.3} parent=11 // pred_check_branch
          %123 = sbr.rel (%p121) target = $region16
        $region15: #{cnnblock_forward.3} parent=11 // pred_region
          _
        $region16: #{cnnblock_forward.3} parent=11 // pred_fallthru
          _
        // Predicated region
        $region17: #{cnnblock_forward.3} parent=11 // pred_check
          %p124 = pneg %p80
        $region18: #{cnnblock_forward.3} parent=11 // pred_check_branch
          %126 = sbr.rel (%p124) target = $region20
        $region19: #{cnnblock_forward.3} parent=11 // pred_region
          _
        $region20: #{cnnblock_forward.3} parent=11 // pred_fallthru
          _
      $region12: #{cnnblock_forward.3} parent=5 // pred_fallthru
        _
      %p127 = scmp.lt.s32.totalorder %s12, 2
      // Predicated region
      $region21: #{cnnblock_forward.3} parent=5 // pred_check
        %p128 = pneg %p127
      $region22: #{cnnblock_forward.3} parent=5 // pred_check_branch
        %130 = sbr.rel (%p128) target = $region24
      $region23: #{cnnblock_forward.3} parent=5 // pred_region
        // Predicated region
        $region25: #{cnnblock_forward.3} parent=23 // pred_check
          %p131 = pneg %p32
        $region26: #{cnnblock_forward.3} parent=23 // pred_check_branch
          %133 = sbr.rel (%p131) target = $region28
        $region27: #{cnnblock_forward.3} parent=23 // pred_region
          %s134 = smul.u32 32, %s12
          %p135 = scmp.lt.s32.totalorder %s134, 63
          %s136 = scalar_select %p135, %s134, 63
          %s137 = smul.addr %s136, 8
          %s138 = scalar_lea.vmem %s0, %s137
          %s139 = smul.u32 32, %s12
        $region28: #{cnnblock_forward.3} parent=23 // pred_fallthru
          _
      $region24: #{cnnblock_forward.3} parent=5 // pred_fallthru
        _
      %p140 = scmp.le.s32.totalorder 1, %s12
      %p141 = scmp.lt.s32.totalorder %s12, 3
      %p142 = pnand %p140, %p141
      %p143 = pneg %p142
      // Predicated region
      $region29: #{cnnblock_forward.3} parent=5 // pred_check
        _
      $region30: #{cnnblock_forward.3} parent=5 // pred_check_branch
        %145 = sbr.rel (%p142) target = $region32
      $region31: #{cnnblock_forward.3} parent=5 // pred_region
        %s146 = ssub.s32 %s12, 1
        %s147 = smul.u32 32, %s17
        %p148 = scmp.lt.s32.totalorder %s147, 63
        %s149 = scalar_select %p148, %s147, 63
        %s150 = smul.addr %s149, 8
        %s151 = scalar_lea.vmem %s0, %s150
        %p152 = pneg %p38
        %p153 = pneg %p35
        %p154 = pneg %p59
        %p155 = pneg %p56
        %p156 = pneg %p80
        %p157 = pneg %p77
        %p158 = pneg %p106
        %p159 = pneg %p103
        %s160 = sand.u32 %s93, 1
        %s161 = scalar_lea.sflag [#allocation3], %s160
        %s162 = sand.u32 %s93, 1
        %s163 = smul.addr %s162, 256
        %s164 = scalar_lea.vmem [#allocation2], %s163
        %s165 = smul.u32 32, %s17
        %p166 = scmp.lt.s32.totalorder %s165, 63
        %s167 = scalar_select %p166, %s165, 63
        %s168 = smul.addr %s167, 8
        %s169 = scalar_lea.vmem %s0, %s168
        %s170 = smul.u32 32, %s17
        %s171 = smul.u32 32, %s17
        %v172 = vld [vmem:[%s169] sm:$0xff]
        %v173 = vld [vmem:[%s169 + $0x8] sm:$0xff]
        %v174 = vld [vmem:[%s169 + $0x10] sm:$0xff]
        %v175 = vld [vmem:[%s169 + $0x18] sm:$0xff]
        %v176 = vld [vmem:[%s169 + $0x20] sm:$0xff]
        %v177 = vld [vmem:[%s169 + $0x28] sm:$0xff]
        %v178 = vld [vmem:[%s169 + $0x30] sm:$0xff]
        %v179 = vld [vmem:[%s169 + $0x38] sm:$0xff]
        %v180 = vld [vmem:[%s169 + $0x40] sm:$0xff]
        %v181 = vld [vmem:[%s169 + $0x48] sm:$0xff]
        %v182 = vld [vmem:[%s169 + $0x50] sm:$0xff]
        %v183 = vld [vmem:[%s169 + $0x58] sm:$0xff]
        %v184 = vld [vmem:[%s169 + $0x60] sm:$0xff]
        %v185 = vld [vmem:[%s169 + $0x68] sm:$0xff]
        %v186 = vld [vmem:[%s169 + $0x70] sm:$0xff]
        %v187 = vld [vmem:[%s169 + $0x78] sm:$0xff]
        %v188 = vld [vmem:[%s169 + $0x80] sm:$0xff]
        %v189 = vld [vmem:[%s169 + $0x88] sm:$0xff]
        %v190 = vld [vmem:[%s169 + $0x90] sm:$0xff]
        %v191 = vld [vmem:[%s169 + $0x98] sm:$0xff]
        %v192 = vld [vmem:[%s169 + $0xa0] sm:$0xff]
        %v193 = vld [vmem:[%s169 + $0xa8] sm:$0xff]
        %v194 = vld [vmem:[%s169 + $0xb0] sm:$0xff]
        %v195 = vld [vmem:[%s169 + $0xb8] sm:$0xff]
        %v196 = vld [vmem:[%s169 + $0xc0] sm:$0xff]
        %v197 = vld [vmem:[%s169 + $0xc8] sm:$0xff]
        %v198 = vld [vmem:[%s169 + $0xd0] sm:$0xff]
        %v199 = vld [vmem:[%s169 + $0xd8] sm:$0xff]
        %v200 = vld [vmem:[%s169 + $0xe0] sm:$0xff]
        %v201 = vld [vmem:[%s169 + $0xe8] sm:$0xff]
        %v202 = vld [vmem:[%s169 + $0xf0] sm:$0xff]
        %v203 = vld [vmem:[%s169 + $0xf8] sm:$0xff]
        %v204 = vld [vmem:[%s1] sm:$0x1]
        %v206 = vperm.slane %v204, 0
        %v208 = vmul.f32 %v172, %v206
        %v209 = vmul.f32 %v173, %v206
        %v210 = vmul.f32 %v174, %v206
        %v211 = vmul.f32 %v175, %v206
        %v212 = vmul.f32 %v176, %v206
        %v213 = vmul.f32 %v177, %v206
        %v214 = vmul.f32 %v178, %v206
        %v215 = vmul.f32 %v179, %v206
        %v216 = vmul.f32 %v180, %v206
        %v217 = vmul.f32 %v181, %v206
        %v218 = vmul.f32 %v182, %v206
        %v219 = vmul.f32 %v183, %v206
        %v220 = vmul.f32 %v184, %v206
        %v221 = vmul.f32 %v185, %v206
        %v222 = vmul.f32 %v186, %v206
        %v223 = vmul.f32 %v187, %v206
        %v224 = vmul.f32 %v188, %v206
        %v225 = vmul.f32 %v189, %v206
        %v226 = vmul.f32 %v190, %v206
        %v227 = vmul.f32 %v191, %v206
        %v228 = vmul.f32 %v192, %v206
        %v229 = vmul.f32 %v193, %v206
        %v230 = vmul.f32 %v194, %v206
        %v231 = vmul.f32 %v195, %v206
        %v232 = vmul.f32 %v196, %v206
        %v233 = vmul.f32 %v197, %v206
        %v234 = vmul.f32 %v198, %v206
        %v235 = vmul.f32 %v199, %v206
        %v236 = vmul.f32 %v200, %v206
        %v237 = vmul.f32 %v201, %v206
        %v238 = vmul.f32 %v202, %v206
        %v239 = vmul.f32 %v203, %v206
        %v240 = vld [vmem:[%s2] sm:$0x1]
        %v242 = vperm.slane %v240, 0
        %v244 = vadd.f32 %v208, %v242
        %v245 = vadd.f32 %v209, %v242
        %v246 = vadd.f32 %v210, %v242
        %v247 = vadd.f32 %v211, %v242
        %v248 = vadd.f32 %v212, %v242
        %v249 = vadd.f32 %v213, %v242
        %v250 = vadd.f32 %v214, %v242
        %v251 = vadd.f32 %v215, %v242
        %v252 = vadd.f32 %v216, %v242
        %v253 = vadd.f32 %v217, %v242
        %v254 = vadd.f32 %v218, %v242
        %v255 = vadd.f32 %v219, %v242
        %v256 = vadd.f32 %v220, %v242
        %v257 = vadd.f32 %v221, %v242
        %v258 = vadd.f32 %v222, %v242
        %v259 = vadd.f32 %v223, %v242
        %v260 = vadd.f32 %v224, %v242
        %v261 = vadd.f32 %v225, %v242
        %v262 = vadd.f32 %v226, %v242
        %v263 = vadd.f32 %v227, %v242
        %v264 = vadd.f32 %v228, %v242
        %v265 = vadd.f32 %v229, %v242
        %v266 = vadd.f32 %v230, %v242
        %v267 = vadd.f32 %v231, %v242
        %v268 = vadd.f32 %v232, %v242
        %v269 = vadd.f32 %v233, %v242
        %v270 = vadd.f32 %v234, %v242
        %v271 = vadd.f32 %v235, %v242
        %v272 = vadd.f32 %v236, %v242
        %v273 = vadd.f32 %v237, %v242
        %v274 = vadd.f32 %v238, %v242
        %v275 = vadd.f32 %v239, %v242
        %vm276 = vcmp.ge.f32.partialorder %v244, 0.0
        %vm277 = vcmp.ge.f32.partialorder %v245, 0.0
        %vm278 = vcmp.ge.f32.partialorder %v246, 0.0
        %vm279 = vcmp.ge.f32.partialorder %v247, 0.0
        %vm280 = vcmp.ge.f32.partialorder %v248, 0.0
        %vm281 = vcmp.ge.f32.partialorder %v249, 0.0
        %vm282 = vcmp.ge.f32.partialorder %v250, 0.0
        %vm283 = vcmp.ge.f32.partialorder %v251, 0.0
        %vm284 = vcmp.ge.f32.partialorder %v252, 0.0
        %vm285 = vcmp.ge.f32.partialorder %v253, 0.0
        %vm286 = vcmp.ge.f32.partialorder %v254, 0.0
        %vm287 = vcmp.ge.f32.partialorder %v255, 0.0
        %vm288 = vcmp.ge.f32.partialorder %v256, 0.0
        %vm289 = vcmp.ge.f32.partialorder %v257, 0.0
        %vm290 = vcmp.ge.f32.partialorder %v258, 0.0
        %vm291 = vcmp.ge.f32.partialorder %v259, 0.0
        %vm292 = vcmp.ge.f32.partialorder %v260, 0.0
        %vm293 = vcmp.ge.f32.partialorder %v261, 0.0
        %vm294 = vcmp.ge.f32.partialorder %v262, 0.0
        %vm295 = vcmp.ge.f32.partialorder %v263, 0.0
        %vm296 = vcmp.ge.f32.partialorder %v264, 0.0
        %vm297 = vcmp.ge.f32.partialorder %v265, 0.0
        %vm298 = vcmp.ge.f32.partialorder %v266, 0.0
        %vm299 = vcmp.ge.f32.partialorder %v267, 0.0
        %vm300 = vcmp.ge.f32.partialorder %v268, 0.0
        %vm301 = vcmp.ge.f32.partialorder %v269, 0.0
        %vm302 = vcmp.ge.f32.partialorder %v270, 0.0
        %vm303 = vcmp.ge.f32.partialorder %v271, 0.0
        %vm304 = vcmp.ge.f32.partialorder %v272, 0.0
        %vm305 = vcmp.ge.f32.partialorder %v273, 0.0
        %vm306 = vcmp.ge.f32.partialorder %v274, 0.0
        %vm307 = vcmp.ge.f32.partialorder %v275, 0.0
        %v308 = vmul.f32 %v244, 0.01
        %v309 = vmul.f32 %v245, 0.01
        %v310 = vmul.f32 %v246, 0.01
        %v311 = vmul.f32 %v247, 0.01
        %v312 = vmul.f32 %v248, 0.01
        %v313 = vmul.f32 %v249, 0.01
        %v314 = vmul.f32 %v250, 0.01
        %v315 = vmul.f32 %v251, 0.01
        %v316 = vmul.f32 %v252, 0.01
        %v317 = vmul.f32 %v253, 0.01
        %v318 = vmul.f32 %v254, 0.01
        %v319 = vmul.f32 %v255, 0.01
        %v320 = vmul.f32 %v256, 0.01
        %v321 = vmul.f32 %v257, 0.01
        %v322 = vmul.f32 %v258, 0.01
        %v323 = vmul.f32 %v259, 0.01
        %v324 = vmul.f32 %v260, 0.01
        %v325 = vmul.f32 %v261, 0.01
        %v326 = vmul.f32 %v262, 0.01
        %v327 = vmul.f32 %v263, 0.01
        %v328 = vmul.f32 %v264, 0.01
        %v329 = vmul.f32 %v265, 0.01
        %v330 = vmul.f32 %v266, 0.01
        %v331 = vmul.f32 %v267, 0.01
        %v332 = vmul.f32 %v268, 0.01
        %v333 = vmul.f32 %v269, 0.01
        %v334 = vmul.f32 %v270, 0.01
        %v335 = vmul.f32 %v271, 0.01
        %v336 = vmul.f32 %v272, 0.01
        %v337 = vmul.f32 %v273, 0.01
        %v338 = vmul.f32 %v274, 0.01
        %v339 = vmul.f32 %v275, 0.01
        %v340 = vsel %vm276, %v244, %v308
        %v341 = vsel %vm277, %v245, %v309
        %v342 = vsel %vm278, %v246, %v310
        %v343 = vsel %vm279, %v247, %v311
        %v344 = vsel %vm280, %v248, %v312
        %v345 = vsel %vm281, %v249, %v313
        %v346 = vsel %vm282, %v250, %v314
        %v347 = vsel %vm283, %v251, %v315
        %v348 = vsel %vm284, %v252, %v316
        %v349 = vsel %vm285, %v253, %v317
        %v350 = vsel %vm286, %v254, %v318
        %v351 = vsel %vm287, %v255, %v319
        %v352 = vsel %vm288, %v256, %v320
        %v353 = vsel %vm289, %v257, %v321
        %v354 = vsel %vm290, %v258, %v322
        %v355 = vsel %vm291, %v259, %v323
        %v356 = vsel %vm292, %v260, %v324
        %v357 = vsel %vm293, %v261, %v325
        %v358 = vsel %vm294, %v262, %v326
        %v359 = vsel %vm295, %v263, %v327
        %v360 = vsel %vm296, %v264, %v328
        %v361 = vsel %vm297, %v265, %v329
        %v362 = vsel %vm298, %v266, %v330
        %v363 = vsel %vm299, %v267, %v331
        %v364 = vsel %vm300, %v268, %v332
        %v365 = vsel %vm301, %v269, %v333
        %v366 = vsel %vm302, %v270, %v334
        %v367 = vsel %vm303, %v271, %v335
        %v368 = vsel %vm304, %v272, %v336
        %v369 = vsel %vm305, %v273, %v337
        %v370 = vsel %vm306, %v274, %v338
        %v371 = vsel %vm307, %v275, %v339
        %372 = vst [vmem:[%s164] sm:$0xff] %v340
        %373 = vst [vmem:[%s164 + $0x8] sm:$0xff] %v341
        %374 = vst [vmem:[%s164 + $0x10] sm:$0xff] %v342
        %375 = vst [vmem:[%s164 + $0x18] sm:$0xff] %v343
        %376 = vst [vmem:[%s164 + $0x20] sm:$0xff] %v344
        %377 = vst [vmem:[%s164 + $0x28] sm:$0xff] %v345
        %378 = vst [vmem:[%s164 + $0x30] sm:$0xff] %v346
        %379 = vst [vmem:[%s164 + $0x38] sm:$0xff] %v347
        %380 = vst [vmem:[%s164 + $0x40] sm:$0xff] %v348
        %381 = vst [vmem:[%s164 + $0x48] sm:$0xff] %v349
        %382 = vst [vmem:[%s164 + $0x50] sm:$0xff] %v350
        %383 = vst [vmem:[%s164 + $0x58] sm:$0xff] %v351
        %384 = vst [vmem:[%s164 + $0x60] sm:$0xff] %v352
        %385 = vst [vmem:[%s164 + $0x68] sm:$0xff] %v353
        %386 = vst [vmem:[%s164 + $0x70] sm:$0xff] %v354
        %387 = vst [vmem:[%s164 + $0x78] sm:$0xff] %v355
        %388 = vst [vmem:[%s164 + $0x80] sm:$0xff] %v356
        %389 = vst [vmem:[%s164 + $0x88] sm:$0xff] %v357
        %390 = vst [vmem:[%s164 + $0x90] sm:$0xff] %v358
        %391 = vst [vmem:[%s164 + $0x98] sm:$0xff] %v359
        %392 = vst [vmem:[%s164 + $0xa0] sm:$0xff] %v360
        %393 = vst [vmem:[%s164 + $0xa8] sm:$0xff] %v361
        %394 = vst [vmem:[%s164 + $0xb0] sm:$0xff] %v362
        %395 = vst [vmem:[%s164 + $0xb8] sm:$0xff] %v363
        %396 = vst [vmem:[%s164 + $0xc0] sm:$0xff] %v364
        %397 = vst [vmem:[%s164 + $0xc8] sm:$0xff] %v365
        %398 = vst [vmem:[%s164 + $0xd0] sm:$0xff] %v366
        %399 = vst [vmem:[%s164 + $0xd8] sm:$0xff] %v367
        %400 = vst [vmem:[%s164 + $0xe0] sm:$0xff] %v368
        %401 = vst [vmem:[%s164 + $0xe8] sm:$0xff] %v369
        %402 = vst [vmem:[%s164 + $0xf0] sm:$0xff] %v370
        %403 = vst [vmem:[%s164 + $0xf8] sm:$0xff] %v371
        %s404 = sand.u32 %s93, 1
        %s405 = scalar_lea.sflag [#allocation3], %s404
        %s406 = sand.u32 %s93, 1
        %s407 = smul.addr %s406, 256
        %s408 = scalar_lea.vmem [#allocation2], %s407
        // Predicated region
        $region33: #{cnnblock_forward.3} parent=31 // pred_check
          %p409 = pneg %p103
        $region34: #{cnnblock_forward.3} parent=31 // pred_check_branch
          %411 = sbr.rel (%p409) target = $region36
        $region35: #{cnnblock_forward.3} parent=31 // pred_region
          %s412 = smul.u32 32, %s17
          %414 = vsyncadd %s405, 0
          %s415 = smul.addr %s412, 8
          %s416 = scalar_lea.hbm %s3, %s415
          %s417 = sshll.u32 %s408, 4
          %s418 = int_to_ptr.vmem [resolvable:$true] %s417
          %s419 = sshll.u32 %s416, 4
          %s420 = int_to_ptr.hbm [resolvable:$true] %s419
          %425 = dma.vmem_to_hbm [thread:$0]  %s418, 4096, %s420, %s405, 128, 128, 8
        $region36: #{cnnblock_forward.3} parent=31 // pred_fallthru
          _
      $region32: #{cnnblock_forward.3} parent=5 // pred_fallthru
        _
      %p426 = scmp.le.s32.totalorder 2, %s12
      // Predicated region
      $region37: #{cnnblock_forward.3} parent=5 // pred_check
        %p427 = pneg %p426
      $region38: #{cnnblock_forward.3} parent=5 // pred_check_branch
        %429 = sbr.rel (%p427) target = $region40
      $region39: #{cnnblock_forward.3} parent=5 // pred_region
        %s430 = ssub.s32 %s12, 2
        // Predicated region
        $region41: #{cnnblock_forward.3} parent=39 // pred_check
          %p431 = pneg %p109
        $region42: #{cnnblock_forward.3} parent=39 // pred_check_branch
          %433 = sbr.rel (%p431) target = $region44
        $region43: #{cnnblock_forward.3} parent=39 // pred_region
          %s434 = sand.u32 %s94, 1
          %s435 = scalar_lea.sflag [#allocation3], %s434
          %s436 = sand.u32 %s94, 1
          %s437 = smul.addr %s436, 256
          %s438 = scalar_lea.vmem [#allocation2], %s437
          %440 = dma.done %s435, 4096
        $region44: #{cnnblock_forward.3} parent=39 // pred_fallthru
          _
      $region40: #{cnnblock_forward.3} parent=5 // pred_fallthru
        _
    $region6: #{cnnblock_forward.3} parent=1 // loop_footer
      %s16 = sadd.s32 1, %s12
    $region7: #{cnnblock_forward.3} parent=1 // loop_footer_branch
      %11 = sbr.rel target = $region3
    $region8: #{cnnblock_forward.3} parent=1 // loop_exit
      _
    %441 = vsyncpa [#allocation3], 1
    %s442 = scalar_lea.sflag [#allocation3], 1
    %443 = vsyncpa %s442, 1

// kernel: cnnblock_forward.2
$region0: #{cnnblock_forward.2}
  #allocation0 [shape = 'u32[]', space=smem, size = 0x4, offset = 0x4, fixed_abs, tag = 'smem constant byte address 0x4 - core index']
  #allocation1 [shape = 'u32[72,128]{1,0:T(1,128)}', space=vmem, size = 0x9000, scoped, tag = 'internal scratch']
  %s0 = inlined_call_operand.vmem [shape: bf16[512,144], index: 0, kind: input, shape index: {}]
  %s1 = inlined_call_operand.vmem [shape: bf16[144,128], index: 1, kind: input, shape index: {}]
  %s2 = inlined_call_operand.vmem [shape: f32[512,128], index: 2, kind: output, shape index: {0}]
  %s3 = inlined_call_operand.vmem [shape: f32[16,128], index: 3, kind: output, shape index: {1}]
  %4 = xla_tuple %s2, %s3
  %s5 = sld [smem:[#allocation0]]
  $region49: #{cnnblock_forward.2} parent=0
    _
  %s7 = ssub.s32 1, %s5
  %s8 = scalar_select 0, %s7, %s5
  loop: start=0, step=1, limit=4
  $region2: #{cnnblock_forward.2} parent=0 // loop_pre_header
    _
  $region3: #{cnnblock_forward.2} parent=0 // loop_header
    %s10 = sphi 0, %s14
    %p11 = scmp.ge.s32.totalorder %s10, 4
    %s20 = sphi 0, %s22
    %s23 = sphi 0, %s20
    %s24 = sphi 0, %s23
    %s40 = sphi 0, %s24
    %s44 = sphi 0, %s44
    %s46 = sphi 0, %s44
    %s47 = sphi 0, %s46
    %s61 = sphi 0, %s47
    %s67 = sphi 0, %s69
    %s70 = sphi 0, %s67
    %s71 = sphi 0, %s70
    %s87 = sphi 0, %s71
    %s93 = sphi 0, %s95
    %s96 = sphi 0, %s93
    %s97 = sphi 0, %s96
    %s113 = sphi 0, %s97
  $region4: #{cnnblock_forward.2} parent=0 // loop_header_branch
    %13 = sbr.rel (%p11) target = $region8
  $region5: #{cnnblock_forward.2} parent=0 // loop_body
    %s15 = ssub.s32 %s10, 1
    %s16 = ssub.s32 %s10, 2
    %s17 = sadd.s32 %s10, 1
    %s18 = ssub.s32 %s10, %s17
    %p19 = scmp.eq.s32.totalorder %s18, 0
    %s21 = sadd.s32 %s20, 1
    %s22 = scalar_select %p19, %s20, %s21
    %p25 = pneg %p19
    %p26 = scmp.eq.s32.totalorder %s10, 1
    %p27 = por %p25, %p26
    %p28 = scmp.ne.s32.totalorder %s20, %s23
    %p29 = scmp.eq.s32.totalorder %s10, 0
    %p30 = por %p28, %p29
    %p31 = scmp.ne.s32.totalorder %s20, %s23
    %p32 = scmp.eq.s32.totalorder %s15, 1
    %p33 = por %p31, %p32
    %p34 = scmp.ne.s32.totalorder %s23, %s24
    %p35 = scmp.eq.s32.totalorder %s15, 0
    %p36 = por %p34, %p35
    %p37 = scmp.ne.s32.totalorder %s23, %s24
    %p38 = scmp.eq.s32.totalorder %s16, 1
    %p39 = por %p37, %p38
    %p41 = scmp.ne.s32.totalorder %s24, %s40
    %p42 = scmp.eq.s32.totalorder %s16, 0
    %p43 = por %p41, %p42
    %s45 = sadd.s32 %s44, 1
    %p48 = scmp.eq.s32.totalorder %s10, 1
    %p49 = scmp.ne.s32.totalorder %s44, %s46
    %p50 = scmp.eq.s32.totalorder %s10, 0
    %p51 = por %p49, %p50
    %p52 = scmp.ne.s32.totalorder %s44, %s46
    %p53 = scmp.eq.s32.totalorder %s15, 1
    %p54 = por %p52, %p53
    %p55 = scmp.ne.s32.totalorder %s46, %s47
    %p56 = scmp.eq.s32.totalorder %s15, 0
    %p57 = por %p55, %p56
    %p58 = scmp.ne.s32.totalorder %s46, %s47
    %p59 = scmp.eq.s32.totalorder %s16, 1
    %p60 = por %p58, %p59
    %p62 = scmp.ne.s32.totalorder %s47, %s61
    %p63 = scmp.eq.s32.totalorder %s16, 0
    %p64 = por %p62, %p63
    %s65 = ssub.s32 %s10, %s17
    %p66 = scmp.eq.s32.totalorder %s65, 0
    %s68 = sadd.s32 %s67, 1
    %s69 = scalar_select %p66, %s67, %s68
    %p72 = pneg %p66
    %p73 = scmp.eq.s32.totalorder %s10, 1
    %p74 = por %p72, %p73
    %p75 = scmp.ne.s32.totalorder %s67, %s70
    %p76 = scmp.eq.s32.totalorder %s10, 0
    %p77 = por %p75, %p76
    %p78 = scmp.ne.s32.totalorder %s67, %s70
    %p79 = scmp.eq.s32.totalorder %s15, 1
    %p80 = por %p78, %p79
    %p81 = scmp.ne.s32.totalorder %s70, %s71
    %p82 = scmp.eq.s32.totalorder %s15, 0
    %p83 = por %p81, %p82
    %p84 = scmp.ne.s32.totalorder %s70, %s71
    %p85 = scmp.eq.s32.totalorder %s16, 1
    %p86 = por %p84, %p85
    %p88 = scmp.ne.s32.totalorder %s71, %s87
    %p89 = scmp.eq.s32.totalorder %s16, 0
    %p90 = por %p88, %p89
    %s91 = ssub.s32 %s10, %s17
    %p92 = scmp.eq.s32.totalorder %s91, 0
    %s94 = sadd.s32 %s93, 1
    %s95 = scalar_select %p92, %s93, %s94
    %p98 = pneg %p92
    %p99 = scmp.eq.s32.totalorder %s10, 1
    %p100 = por %p98, %p99
    %p101 = scmp.ne.s32.totalorder %s93, %s96
    %p102 = scmp.eq.s32.totalorder %s10, 0
    %p103 = por %p101, %p102
    %p104 = scmp.ne.s32.totalorder %s93, %s96
    %p105 = scmp.eq.s32.totalorder %s15, 1
    %p106 = por %p104, %p105
    %p107 = scmp.ne.s32.totalorder %s96, %s97
    %p108 = scmp.eq.s32.totalorder %s15, 0
    %p109 = por %p107, %p108
    %p110 = scmp.ne.s32.totalorder %s96, %s97
    %p111 = scmp.eq.s32.totalorder %s16, 1
    %p112 = por %p110, %p111
    %p114 = scmp.ne.s32.totalorder %s97, %s113
    %p115 = scmp.eq.s32.totalorder %s16, 0
    %p116 = por %p114, %p115
    %p117 = scmp.le.s32.totalorder 1, %s10
    %p118 = scmp.lt.s32.totalorder %s10, 3
    %p119 = pnand %p117, %p118
    %p120 = pneg %p119
    // Predicated region
    $region9: #{cnnblock_forward.2} parent=5 // pred_check
      _
    $region10: #{cnnblock_forward.2} parent=5 // pred_check_branch
      %122 = sbr.rel (%p119) target = $region12
    $region11: #{cnnblock_forward.2} parent=5 // pred_region
      %s123 = ssub.s32 %s10, 1
      // Predicated region
      $region13: #{cnnblock_forward.2} parent=11 // pred_check
        %p124 = pneg %p57
      $region14: #{cnnblock_forward.2} parent=11 // pred_check_branch
        %126 = sbr.rel (%p124) target = $region16
      $region15: #{cnnblock_forward.2} parent=11 // pred_region
        _
      $region16: #{cnnblock_forward.2} parent=11 // pred_fallthru
        _
    $region12: #{cnnblock_forward.2} parent=5 // pred_fallthru
      _
    %p127 = scmp.lt.s32.totalorder %s10, 2
    // Predicated region
    $region17: #{cnnblock_forward.2} parent=5 // pred_check
      %p128 = pneg %p127
    $region18: #{cnnblock_forward.2} parent=5 // pred_check_branch
      %130 = sbr.rel (%p128) target = $region20
    $region19: #{cnnblock_forward.2} parent=5 // pred_region
      // Predicated region
      $region21: #{cnnblock_forward.2} parent=19 // pred_check
        %p131 = pneg %p30
      $region22: #{cnnblock_forward.2} parent=19 // pred_check_branch
        %133 = sbr.rel (%p131) target = $region24
      $region23: #{cnnblock_forward.2} parent=19 // pred_region
        %s134 = smul.u32 32, %s10
        %p135 = scmp.lt.s32.totalorder %s134, 63
        %s136 = scalar_select %p135, %s134, 63
        %s137 = smul.addr %s136, 2
        %s138 = smul.addr %s137, 4
        %s139 = scalar_lea.vmem %s0, %s138
        %s140 = smul.u32 32, %s10
      $region24: #{cnnblock_forward.2} parent=19 // pred_fallthru
        _
    $region20: #{cnnblock_forward.2} parent=5 // pred_fallthru
      _
    %p141 = scmp.le.s32.totalorder 1, %s10
    %p142 = scmp.lt.s32.totalorder %s10, 3
    %p143 = pnand %p141, %p142
    %p144 = pneg %p143
    // Predicated region
    $region25: #{cnnblock_forward.2} parent=5 // pred_check
      _
    $region26: #{cnnblock_forward.2} parent=5 // pred_check_branch
      %146 = sbr.rel (%p143) target = $region28
    $region27: #{cnnblock_forward.2} parent=5 // pred_region
      %s147 = ssub.s32 %s10, 1
      %s148 = smul.u32 32, %s15
      %p149 = scmp.lt.s32.totalorder %s148, 63
      %s150 = scalar_select %p149, %s148, 63
      %s151 = smul.addr %s150, 2
      %s152 = smul.addr %s151, 4
      %s153 = scalar_lea.vmem %s0, %s152
      %p154 = pneg %p36
      %p155 = pneg %p33
      %p156 = pneg %p57
      %p157 = pneg %p54
      %p158 = pneg %p83
      %p159 = pneg %p80
      %s160 = smul.u32 32, %s15
      %p161 = scmp.lt.s32.totalorder %s160, 63
      %s162 = scalar_select %p161, %s160, 63
      %s163 = smul.addr %s162, 8
      %s164 = scalar_lea.vmem %s2, %s163
      %p165 = pneg %p109
      %p166 = pneg %p106
      %p167 = scmp.lt.s32.totalorder %s15, 1
      %s168 = scalar_select %p167, %s15, 1
      %s169 = smul.addr %s168, 8
      %s170 = scalar_lea.vmem %s3, %s169
      %s171 = smul.u32 32, %s15
      %p172 = scmp.lt.s32.totalorder %s171, 63
      %s173 = scalar_select %p172, %s171, 63
      %s174 = smul.addr %s173, 2
      %s175 = smul.addr %s174, 4
      %s176 = scalar_lea.vmem %s0, %s175
      %s177 = smul.u32 32, %s15
      %s178 = smul.u32 32, %s15
      %p179 = scmp.lt.s32.totalorder %s178, 63
      %s180 = scalar_select %p179, %s178, 63
      %s181 = smul.addr %s180, 8
      %s182 = scalar_lea.vmem %s2, %s181
      %s183 = smul.u32 32, %s15
      %p184 = scmp.lt.s32.totalorder %s15, 1
      %s185 = scalar_select %p184, %s15, 1
      %s186 = smul.addr %s185, 8
      %s187 = scalar_lea.vmem %s3, %s186
      %v189 = vld [vmem:[%s176] sm:$0xff]
      %v190 = vld [vmem:[%s176 + $0x8] sm:$0xff]
      %v191 = vld [vmem:[%s176 + $0x10] sm:$0xff]
      %v192 = vld [vmem:[%s176 + $0x18] sm:$0xff]
      %v193 = vld [vmem:[%s176 + $0x20] sm:$0xff]
      %v194 = vld [vmem:[%s176 + $0x28] sm:$0xff]
      %v195 = vld [vmem:[%s176 + $0x30] sm:$0xff]
      %v196 = vld [vmem:[%s176 + $0x38] sm:$0xff]
      %v197 = vld [vmem:[%s176 + $0x40] sm:$0xff]
      %v198 = vld [vmem:[%s176 + $0x48] sm:$0xff]
      %v199 = vld [vmem:[%s176 + $0x50] sm:$0xff]
      %v200 = vld [vmem:[%s176 + $0x58] sm:$0xff]
      %v201 = vld [vmem:[%s176 + $0x60] sm:$0xff]
      %v202 = vld [vmem:[%s176 + $0x68] sm:$0xff]
      %v203 = vld [vmem:[%s176 + $0x70] sm:$0xff]
      %v204 = vld [vmem:[%s176 + $0x78] sm:$0xff]
      %v205 = vld [vmem:[%s176 + $0x80] sm:$0xff]
      %v206 = vld [vmem:[%s176 + $0x88] sm:$0xff]
      %v207 = vld [vmem:[%s176 + $0x90] sm:$0xff]
      %v208 = vld [vmem:[%s176 + $0x98] sm:$0xff]
      %v209 = vld [vmem:[%s176 + $0xa0] sm:$0xff]
      %v210 = vld [vmem:[%s176 + $0xa8] sm:$0xff]
      %v211 = vld [vmem:[%s176 + $0xb0] sm:$0xff]
      %v212 = vld [vmem:[%s176 + $0xb8] sm:$0xff]
      %v213 = vld [vmem:[%s176 + $0xc0] sm:$0xff]
      %v214 = vld [vmem:[%s176 + $0xc8] sm:$0xff]
      %v215 = vld [vmem:[%s176 + $0xd0] sm:$0xff]
      %v216 = vld [vmem:[%s176 + $0xd8] sm:$0xff]
      %v217 = vld [vmem:[%s176 + $0xe0] sm:$0xff]
      %v218 = vld [vmem:[%s176 + $0xe8] sm:$0xff]
      %v219 = vld [vmem:[%s176 + $0xf0] sm:$0xff]
      %v220 = vld [vmem:[%s176 + $0xf8] sm:$0xff]
      %v221 = vld [vmem:[%s1] sm:$0xf]
      %v222 = vld [vmem:[%s1 + $0x4] sm:$0xf]
      %v223 = vld [vmem:[%s1 + $0x8] sm:$0xf]
      %v224 = vld [vmem:[%s1 + $0xc] sm:$0xf]
      %v225 = vld [vmem:[%s1 + $0x10] sm:$0xf]
      %v226 = vld [vmem:[%s1 + $0x14] sm:$0xf]
      %v227 = vld [vmem:[%s1 + $0x18] sm:$0xf]
      %v228 = vld [vmem:[%s1 + $0x1c] sm:$0xf]
      %v229 = vld [vmem:[%s1 + $0x20] sm:$0xf]
      %v230 = vld [vmem:[%s1 + $0x24] sm:$0xf]
      %v231 = vld [vmem:[%s1 + $0x28] sm:$0xf]
      %v232 = vld [vmem:[%s1 + $0x2c] sm:$0xf]
      %v233 = vld [vmem:[%s1 + $0x30] sm:$0xf]
      %v234 = vld [vmem:[%s1 + $0x34] sm:$0xf]
      %v235 = vld [vmem:[%s1 + $0x38] sm:$0xf]
      %v236 = vld [vmem:[%s1 + $0x3c] sm:$0xf]
      %v237 = vld [vmem:[%s1 + $0x40] sm:$0xf]
      %v238 = vld [vmem:[%s1 + $0x44] sm:$0xf]
      %v271 = vunpack.c.l.b16 %v189
      %v272 = vunpack.c.h.b16 %v189
      %v273 = vunpack.c.l.b16 %v190
      %v274 = vunpack.c.h.b16 %v190
      %v275 = vunpack.c.l.b16 %v191
      %v276 = vunpack.c.h.b16 %v191
      %v277 = vunpack.c.l.b16 %v192
      %v278 = vunpack.c.h.b16 %v192
      %v279 = vunpack.c.l.b16 %v193
      %v280 = vunpack.c.h.b16 %v193
      %v281 = vunpack.c.l.b16 %v194
      %v282 = vunpack.c.h.b16 %v194
      %v283 = vunpack.c.l.b16 %v195
      %v284 = vunpack.c.h.b16 %v195
      %v285 = vunpack.c.l.b16 %v196
      %v286 = vunpack.c.h.b16 %v196
      %v287 = vunpack.c.l.b16 %v197
      %v288 = vunpack.c.h.b16 %v197
      %v289 = vunpack.c.l.b16 %v198
      %v290 = vunpack.c.h.b16 %v198
      %v291 = vunpack.c.l.b16 %v199
      %v292 = vunpack.c.h.b16 %v199
      %v293 = vunpack.c.l.b16 %v200
      %v294 = vunpack.c.h.b16 %v200
      %v295 = vunpack.c.l.b16 %v201
      %v296 = vunpack.c.h.b16 %v201
      %v297 = vunpack.c.l.b16 %v202
      %v298 = vunpack.c.h.b16 %v202
      %v299 = vunpack.c.l.b16 %v203
      %v300 = vunpack.c.h.b16 %v203
      %v301 = vunpack.c.l.b16 %v204
      %v302 = vunpack.c.h.b16 %v204
      %v303 = vunpack.c.l.b16 %v205
      %v304 = vunpack.c.h.b16 %v205
      %v305 = vunpack.c.l.b16 %v206
      %v306 = vunpack.c.h.b16 %v206
      %v307 = vunpack.c.l.b16 %v207
      %v308 = vunpack.c.h.b16 %v207
      %v309 = vunpack.c.l.b16 %v208
      %v310 = vunpack.c.h.b16 %v208
      %v311 = vunpack.c.l.b16 %v209
      %v312 = vunpack.c.h.b16 %v209
      %v313 = vunpack.c.l.b16 %v210
      %v314 = vunpack.c.h.b16 %v210
      %v315 = vunpack.c.l.b16 %v211
      %v316 = vunpack.c.h.b16 %v211
      %v317 = vunpack.c.l.b16 %v212
      %v318 = vunpack.c.h.b16 %v212
      %v319 = vunpack.c.l.b16 %v213
      %v320 = vunpack.c.h.b16 %v213
      %v321 = vunpack.c.l.b16 %v214
      %v322 = vunpack.c.h.b16 %v214
      %v323 = vunpack.c.l.b16 %v215
      %v324 = vunpack.c.h.b16 %v215
      %v325 = vunpack.c.l.b16 %v216
      %v326 = vunpack.c.h.b16 %v216
      %v327 = vunpack.c.l.b16 %v217
      %v328 = vunpack.c.h.b16 %v217
      %v329 = vunpack.c.l.b16 %v218
      %v330 = vunpack.c.h.b16 %v218
      %v331 = vunpack.c.l.b16 %v219
      %v332 = vunpack.c.h.b16 %v219
      %v333 = vunpack.c.l.b16 %v220
      %v334 = vunpack.c.h.b16 %v220
      %v335 = vpack.c.b16 %v273, %v271
      %v336 = vpack.c.b16 %v274, %v272
      %v337 = vpack.c.b16 %v277, %v275
      %v338 = vpack.c.b16 %v278, %v276
      %v339 = vpack.c.b16 %v281, %v279
      %v340 = vpack.c.b16 %v282, %v280
      %v341 = vpack.c.b16 %v285, %v283
      %v342 = vpack.c.b16 %v286, %v284
      %v343 = vpack.c.b16 %v289, %v287
      %v344 = vpack.c.b16 %v290, %v288
      %v345 = vpack.c.b16 %v293, %v291
      %v346 = vpack.c.b16 %v294, %v292
      %v347 = vpack.c.b16 %v297, %v295
      %v348 = vpack.c.b16 %v298, %v296
      %v349 = vpack.c.b16 %v301, %v299
      %v350 = vpack.c.b16 %v302, %v300
      %v351 = vpack.c.b16 %v305, %v303
      %v352 = vpack.c.b16 %v306, %v304
      %v353 = vpack.c.b16 %v309, %v307
      %v354 = vpack.c.b16 %v310, %v308
      %v355 = vpack.c.b16 %v313, %v311
      %v356 = vpack.c.b16 %v314, %v312
      %v357 = vpack.c.b16 %v317, %v315
      %v358 = vpack.c.b16 %v318, %v316
      %v359 = vpack.c.b16 %v321, %v319
      %v360 = vpack.c.b16 %v322, %v320
      %v361 = vpack.c.b16 %v325, %v323
      %v362 = vpack.c.b16 %v326, %v324
      %v363 = vpack.c.b16 %v329, %v327
      %v364 = vpack.c.b16 %v330, %v328
      %v365 = vpack.c.b16 %v333, %v331
      %v366 = vpack.c.b16 %v334, %v332
      %v401 = vunpack.c.l.b16 %v221
      %v402 = vunpack.c.l.b16 %v222
      %v403 = vunpack.c.l.b16 %v223
      %v404 = vunpack.c.l.b16 %v224
      %v405 = vunpack.c.l.b16 %v225
      %v406 = vunpack.c.l.b16 %v226
      %v407 = vunpack.c.l.b16 %v227
      %v408 = vunpack.c.l.b16 %v228
      %v409 = vunpack.c.l.b16 %v229
      %v410 = vunpack.c.l.b16 %v230
      %v411 = vunpack.c.l.b16 %v231
      %v412 = vunpack.c.l.b16 %v232
      %v413 = vunpack.c.l.b16 %v233
      %v414 = vunpack.c.l.b16 %v234
      %v415 = vunpack.c.l.b16 %v235
      %v416 = vunpack.c.l.b16 %v236
      %v417 = vunpack.c.l.b16 %v237
      %v418 = vunpack.c.l.b16 %v238
      %v419 = vpack.c.b16 %v402, %v401
      %v420 = vpack.c.b16 %v404, %v403
      %v421 = vpack.c.b16 %v406, %v405
      %v422 = vpack.c.b16 %v408, %v407
      %v423 = vpack.c.b16 %v410, %v409
      %v424 = vpack.c.b16 %v412, %v411
      %v425 = vpack.c.b16 %v414, %v413
      %v426 = vpack.c.b16 %v416, %v415
      %v427 = vpack.c.b16 %v418, %v417
      %vm437 = vcmask 130048
      %v439 = vsel %vm437, %v336, 0
      %v442 = vsel %vm437, %v338, 0
      %v445 = vsel %vm437, %v340, 0
      %v448 = vsel %vm437, %v342, 0
      %v451 = vsel %vm437, %v344, 0
      %v454 = vsel %vm437, %v346, 0
      %v457 = vsel %vm437, %v348, 0
      %v460 = vsel %vm437, %v350, 0
      %v463 = vsel %vm437, %v352, 0
      %v466 = vsel %vm437, %v354, 0
      %v469 = vsel %vm437, %v356, 0
      %v472 = vsel %vm437, %v358, 0
      %v475 = vsel %vm437, %v360, 0
      %v478 = vsel %vm437, %v362, 0
      %v481 = vsel %vm437, %v364, 0
      %v484 = vsel %vm437, %v366, 0
      %486 = vmatpush.bf16.msra.mxu0 %v426
      %487 = vmatpush.bf16.msra.mxu0 %v425
      %488 = vmatpush.bf16.msra.mxu0 %v424
      %489 = vmatpush.bf16.msra.mxu0 %v423
      %490 = vmatpush.bf16.msra.mxu0 %v422
      %491 = vmatpush.bf16.msra.mxu0 %v421
      %492 = vmatpush.bf16.msra.mxu0 %v420
      %493 = vmatpush.bf16.msra.mxu0 %v419
      %494 = vmatmul.bf16.gmra.mxu0 %v335
      %v495 = vpop.f32.mrf.mxu0
      %v496 = vadd.f32 0.0, %v495
      %v497 = vpop.f32.mrf.mxu0
      %v498 = vadd.f32 0.0, %v497
      %499 = vmatmul.bf16.gmra.mxu0 %v337
      %v500 = vpop.f32.mrf.mxu0
      %v501 = vadd.f32 0.0, %v500
      %v502 = vpop.f32.mrf.mxu0
      %v503 = vadd.f32 0.0, %v502
      %504 = vmatmul.bf16.gmra.mxu0 %v339
      %v505 = vpop.f32.mrf.mxu0
      %v506 = vadd.f32 0.0, %v505
      %v507 = vpop.f32.mrf.mxu0
      %v508 = vadd.f32 0.0, %v507
      %509 = vmatmul.bf16.gmra.mxu0 %v341
      %v510 = vpop.f32.mrf.mxu0
      %v511 = vadd.f32 0.0, %v510
      %v512 = vpop.f32.mrf.mxu0
      %v513 = vadd.f32 0.0, %v512
      %514 = vmatmul.bf16.gmra.mxu0 %v343
      %v515 = vpop.f32.mrf.mxu0
      %v516 = vadd.f32 0.0, %v515
      %v517 = vpop.f32.mrf.mxu0
      %v518 = vadd.f32 0.0, %v517
      %519 = vmatmul.bf16.gmra.mxu0 %v345
      %v520 = vpop.f32.mrf.mxu0
      %v521 = vadd.f32 0.0, %v520
      %v522 = vpop.f32.mrf.mxu0
      %v523 = vadd.f32 0.0, %v522
      %524 = vmatmul.bf16.gmra.mxu0 %v347
      %v525 = vpop.f32.mrf.mxu0
      %v526 = vadd.f32 0.0, %v525
      %v527 = vpop.f32.mrf.mxu0
      %v528 = vadd.f32 0.0, %v527
      %529 = vmatmul.bf16.gmra.mxu0 %v349
      %v530 = vpop.f32.mrf.mxu0
      %v531 = vadd.f32 0.0, %v530
      %v532 = vpop.f32.mrf.mxu0
      %v533 = vadd.f32 0.0, %v532
      %534 = vmatmul.bf16.gmra.mxu0 %v351
      %v535 = vpop.f32.mrf.mxu0
      %v536 = vadd.f32 0.0, %v535
      %v537 = vpop.f32.mrf.mxu0
      %v538 = vadd.f32 0.0, %v537
      %539 = vmatmul.bf16.gmra.mxu0 %v353
      %v540 = vpop.f32.mrf.mxu0
      %v541 = vadd.f32 0.0, %v540
      %v542 = vpop.f32.mrf.mxu0
      %v543 = vadd.f32 0.0, %v542
      %544 = vmatmul.bf16.gmra.mxu0 %v355
      %v545 = vpop.f32.mrf.mxu0
      %v546 = vadd.f32 0.0, %v545
      %v547 = vpop.f32.mrf.mxu0
      %v548 = vadd.f32 0.0, %v547
      %549 = vmatmul.bf16.gmra.mxu0 %v357
      %v550 = vpop.f32.mrf.mxu0
      %v551 = vadd.f32 0.0, %v550
      %v552 = vpop.f32.mrf.mxu0
      %v553 = vadd.f32 0.0, %v552
      %554 = vmatmul.bf16.gmra.mxu0 %v359
      %v555 = vpop.f32.mrf.mxu0
      %v556 = vadd.f32 0.0, %v555
      %v557 = vpop.f32.mrf.mxu0
      %v558 = vadd.f32 0.0, %v557
      %559 = vmatmul.bf16.gmra.mxu0 %v361
      %v560 = vpop.f32.mrf.mxu0
      %v561 = vadd.f32 0.0, %v560
      %v562 = vpop.f32.mrf.mxu0
      %v563 = vadd.f32 0.0, %v562
      %564 = vmatmul.bf16.gmra.mxu0 %v363
      %v565 = vpop.f32.mrf.mxu0
      %v566 = vadd.f32 0.0, %v565
      %v567 = vpop.f32.mrf.mxu0
      %v568 = vadd.f32 0.0, %v567
      %569 = vmatmul.bf16.gmra.mxu0 %v365
      %v570 = vpop.f32.mrf.mxu0
      %v571 = vadd.f32 0.0, %v570
      %v572 = vpop.f32.mrf.mxu0
      %v573 = vadd.f32 0.0, %v572
      %574 = vdwg.mxu0
      %575 = vmatpush.bf16.msra.mxu0 0
      %576 = vmatpush.bf16.msra.mxu0 0
      %577 = vmatpush.bf16.msra.mxu0 0
      %578 = vmatpush.bf16.msra.mxu0 0
      %579 = vmatpush.bf16.msra.mxu0 0
      %580 = vmatpush.bf16.msra.mxu0 0
      %581 = vmatpush.bf16.msra.mxu0 0
      %582 = vmatpush.bf16.msra.mxu0 %v427
      %583 = vmatmul.bf16.gmra.mxu0 %v439
      %v584 = vpop.f32.mrf.mxu0
      %v585 = vadd.f32 %v496, %v584
      %v586 = vpop.f32.mrf.mxu0
      %v587 = vadd.f32 %v498, %v586
      %588 = vmatmul.bf16.gmra.mxu0 %v442
      %v589 = vpop.f32.mrf.mxu0
      %v590 = vadd.f32 %v501, %v589
      %v591 = vpop.f32.mrf.mxu0
      %v592 = vadd.f32 %v503, %v591
      %593 = vmatmul.bf16.gmra.mxu0 %v445
      %v594 = vpop.f32.mrf.mxu0
      %v595 = vadd.f32 %v506, %v594
      %v596 = vpop.f32.mrf.mxu0
      %v597 = vadd.f32 %v508, %v596
      %598 = vmatmul.bf16.gmra.mxu0 %v448
      %v599 = vpop.f32.mrf.mxu0
      %v600 = vadd.f32 %v511, %v599
      %v601 = vpop.f32.mrf.mxu0
      %v602 = vadd.f32 %v513, %v601
      %603 = vmatmul.bf16.gmra.mxu0 %v451
      %v604 = vpop.f32.mrf.mxu0
      %v605 = vadd.f32 %v516, %v604
      %v606 = vpop.f32.mrf.mxu0
      %v607 = vadd.f32 %v518, %v606
      %608 = vmatmul.bf16.gmra.mxu0 %v454
      %v609 = vpop.f32.mrf.mxu0
      %v610 = vadd.f32 %v521, %v609
      %v611 = vpop.f32.mrf.mxu0
      %v612 = vadd.f32 %v523, %v611
      %613 = vmatmul.bf16.gmra.mxu0 %v457
      %v614 = vpop.f32.mrf.mxu0
      %v615 = vadd.f32 %v526, %v614
      %v616 = vpop.f32.mrf.mxu0
      %v617 = vadd.f32 %v528, %v616
      %618 = vmatmul.bf16.gmra.mxu0 %v460
      %v619 = vpop.f32.mrf.mxu0
      %v620 = vadd.f32 %v531, %v619
      %v621 = vpop.f32.mrf.mxu0
      %v622 = vadd.f32 %v533, %v621
      %623 = vmatmul.bf16.gmra.mxu0 %v463
      %v624 = vpop.f32.mrf.mxu0
      %v625 = vadd.f32 %v536, %v624
      %v626 = vpop.f32.mrf.mxu0
      %v627 = vadd.f32 %v538, %v626
      %628 = vmatmul.bf16.gmra.mxu0 %v466
      %v629 = vpop.f32.mrf.mxu0
      %v630 = vadd.f32 %v541, %v629
      %v631 = vpop.f32.mrf.mxu0
      %v632 = vadd.f32 %v543, %v631
      %633 = vmatmul.bf16.gmra.mxu0 %v469
      %v634 = vpop.f32.mrf.mxu0
      %v635 = vadd.f32 %v546, %v634
      %v636 = vpop.f32.mrf.mxu0
      %v637 = vadd.f32 %v548, %v636
      %638 = vmatmul.bf16.gmra.mxu0 %v472
      %v639 = vpop.f32.mrf.mxu0
      %v640 = vadd.f32 %v551, %v639
      %v641 = vpop.f32.mrf.mxu0
      %v642 = vadd.f32 %v553, %v641
      %643 = vmatmul.bf16.gmra.mxu0 %v475
      %v644 = vpop.f32.mrf.mxu0
      %v645 = vadd.f32 %v556, %v644
      %v646 = vpop.f32.mrf.mxu0
      %v647 = vadd.f32 %v558, %v646
      %648 = vmatmul.bf16.gmra.mxu0 %v478
      %v649 = vpop.f32.mrf.mxu0
      %v650 = vadd.f32 %v561, %v649
      %v651 = vpop.f32.mrf.mxu0
      %v652 = vadd.f32 %v563, %v651
      %653 = vmatmul.bf16.gmra.mxu0 %v481
      %v654 = vpop.f32.mrf.mxu0
      %v655 = vadd.f32 %v566, %v654
      %v656 = vpop.f32.mrf.mxu0
      %v657 = vadd.f32 %v568, %v656
      %658 = vmatmul.bf16.gmra.mxu0 %v484
      %v659 = vpop.f32.mrf.mxu0
      %v660 = vadd.f32 %v571, %v659
      %v661 = vpop.f32.mrf.mxu0
      %v662 = vadd.f32 %v573, %v661
      %663 = vdwg.mxu0
      %664 = vst [vmem:[%s182] sm:$0xff] %v585
      %665 = vst [vmem:[%s182 + $0x8] sm:$0xff] %v587
      %666 = vst [vmem:[%s182 + $0x10] sm:$0xff] %v590
      %667 = vst [vmem:[%s182 + $0x18] sm:$0xff] %v592
      %668 = vst [vmem:[%s182 + $0x20] sm:$0xff] %v595
      %669 = vst [vmem:[%s182 + $0x28] sm:$0xff] %v597
      %670 = vst [vmem:[%s182 + $0x30] sm:$0xff] %v600
      %671 = vst [vmem:[%s182 + $0x38] sm:$0xff] %v602
      %672 = vst [vmem:[%s182 + $0x40] sm:$0xff] %v605
      %673 = vst [vmem:[%s182 + $0x48] sm:$0xff] %v607
      %674 = vst [vmem:[%s182 + $0x50] sm:$0xff] %v610
      %675 = vst [vmem:[%s182 + $0x58] sm:$0xff] %v612
      %676 = vst [vmem:[%s182 + $0x60] sm:$0xff] %v615
      %677 = vst [vmem:[%s182 + $0x68] sm:$0xff] %v617
      %678 = vst [vmem:[%s182 + $0x70] sm:$0xff] %v620
      %679 = vst [vmem:[%s182 + $0x78] sm:$0xff] %v622
      %680 = vst [vmem:[%s182 + $0x80] sm:$0xff] %v625
      %681 = vst [vmem:[%s182 + $0x88] sm:$0xff] %v627
      %682 = vst [vmem:[%s182 + $0x90] sm:$0xff] %v630
      %683 = vst [vmem:[%s182 + $0x98] sm:$0xff] %v632
      %684 = vst [vmem:[%s182 + $0xa0] sm:$0xff] %v635
      %685 = vst [vmem:[%s182 + $0xa8] sm:$0xff] %v637
      %686 = vst [vmem:[%s182 + $0xb0] sm:$0xff] %v640
      %687 = vst [vmem:[%s182 + $0xb8] sm:$0xff] %v642
      %688 = vst [vmem:[%s182 + $0xc0] sm:$0xff] %v645
      %689 = vst [vmem:[%s182 + $0xc8] sm:$0xff] %v647
      %690 = vst [vmem:[%s182 + $0xd0] sm:$0xff] %v650
      %691 = vst [vmem:[%s182 + $0xd8] sm:$0xff] %v652
      %692 = vst [vmem:[%s182 + $0xe0] sm:$0xff] %v655
      %693 = vst [vmem:[%s182 + $0xe8] sm:$0xff] %v657
      %694 = vst [vmem:[%s182 + $0xf0] sm:$0xff] %v660
      %695 = vst [vmem:[%s182 + $0xf8] sm:$0xff] %v662
      %v696 = vadd.f32 %v585, %v587
      %v697 = vadd.f32 %v696, %v590
      %v698 = vadd.f32 %v697, %v592
      %v699 = vadd.f32 %v698, %v595
      %v700 = vadd.f32 %v699, %v597
      %v701 = vadd.f32 %v700, %v600
      %v702 = vadd.f32 %v701, %v602
      %v703 = vadd.f32 %v702, %v605
      %v704 = vadd.f32 %v703, %v607
      %v705 = vadd.f32 %v704, %v610
      %v706 = vadd.f32 %v705, %v612
      %v707 = vadd.f32 %v706, %v615
      %v708 = vadd.f32 %v707, %v617
      %v709 = vadd.f32 %v708, %v620
      %v710 = vadd.f32 %v709, %v622
      %v711 = vadd.f32 %v710, %v625
      %v712 = vadd.f32 %v711, %v627
      %v713 = vadd.f32 %v712, %v630
      %v714 = vadd.f32 %v713, %v632
      %v715 = vadd.f32 %v714, %v635
      %v716 = vadd.f32 %v715, %v637
      %v717 = vadd.f32 %v716, %v640
      %v718 = vadd.f32 %v717, %v642
      %v719 = vadd.f32 %v718, %v645
      %v720 = vadd.f32 %v719, %v647
      %v721 = vadd.f32 %v720, %v650
      %v722 = vadd.f32 %v721, %v652
      %v723 = vadd.f32 %v722, %v655
      %v724 = vadd.f32 %v723, %v657
      %v725 = vadd.f32 %v724, %v660
      %v726 = vadd.f32 %v725, %v662
      %v727 = vrot.slane %v726, 4
      %v728 = vadd.f32 %v726, %v727
      %v729 = vrot.slane %v728, 2
      %v730 = vadd.f32 %v728, %v729
      %v731 = vrot.slane %v730, 1
      %v732 = vadd.f32 %v730, %v731
      %v733 = vmul.f32 %v585, %v585
      %v734 = vmul.f32 %v587, %v587
      %v735 = vmul.f32 %v590, %v590
      %v736 = vmul.f32 %v592, %v592
      %v737 = vmul.f32 %v595, %v595
      %v738 = vmul.f32 %v597, %v597
      %v739 = vmul.f32 %v600, %v600
      %v740 = vmul.f32 %v602, %v602
      %v741 = vmul.f32 %v605, %v605
      %v742 = vmul.f32 %v607, %v607
      %v743 = vmul.f32 %v610, %v610
      %v744 = vmul.f32 %v612, %v612
      %v745 = vmul.f32 %v615, %v615
      %v746 = vmul.f32 %v617, %v617
      %v747 = vmul.f32 %v620, %v620
      %v748 = vmul.f32 %v622, %v622
      %v749 = vmul.f32 %v625, %v625
      %v750 = vmul.f32 %v627, %v627
      %v751 = vmul.f32 %v630, %v630
      %v752 = vmul.f32 %v632, %v632
      %v753 = vmul.f32 %v635, %v635
      %v754 = vmul.f32 %v637, %v637
      %v755 = vmul.f32 %v640, %v640
      %v756 = vmul.f32 %v642, %v642
      %v757 = vmul.f32 %v645, %v645
      %v758 = vmul.f32 %v647, %v647
      %v759 = vmul.f32 %v650, %v650
      %v760 = vmul.f32 %v652, %v652
      %v761 = vmul.f32 %v655, %v655
      %v762 = vmul.f32 %v657, %v657
      %v763 = vmul.f32 %v660, %v660
      %v764 = vmul.f32 %v662, %v662
      %v765 = vadd.f32 %v733, %v734
      %v766 = vadd.f32 %v765, %v735
      %v767 = vadd.f32 %v766, %v736
      %v768 = vadd.f32 %v767, %v737
      %v769 = vadd.f32 %v768, %v738
      %v770 = vadd.f32 %v769, %v739
      %v771 = vadd.f32 %v770, %v740
      %v772 = vadd.f32 %v771, %v741
      %v773 = vadd.f32 %v772, %v742
      %v774 = vadd.f32 %v773, %v743
      %v775 = vadd.f32 %v774, %v744
      %v776 = vadd.f32 %v775, %v745
      %v777 = vadd.f32 %v776, %v746
      %v778 = vadd.f32 %v777, %v747
      %v779 = vadd.f32 %v778, %v748
      %v780 = vadd.f32 %v779, %v749
      %v781 = vadd.f32 %v780, %v750
      %v782 = vadd.f32 %v781, %v751
      %v783 = vadd.f32 %v782, %v752
      %v784 = vadd.f32 %v783, %v753
      %v785 = vadd.f32 %v784, %v754
      %v786 = vadd.f32 %v785, %v755
      %v787 = vadd.f32 %v786, %v756
      %v788 = vadd.f32 %v787, %v757
      %v789 = vadd.f32 %v788, %v758
      %v790 = vadd.f32 %v789, %v759
      %v791 = vadd.f32 %v790, %v760
      %v792 = vadd.f32 %v791, %v761
      %v793 = vadd.f32 %v792, %v762
      %v794 = vadd.f32 %v793, %v763
      %v795 = vadd.f32 %v794, %v764
      %v796 = vrot.slane %v795, 4
      %v797 = vadd.f32 %v795, %v796
      %v798 = vrot.slane %v797, 2
      %v799 = vadd.f32 %v797, %v798
      %v800 = vrot.slane %v799, 1
      %v801 = vadd.f32 %v799, %v800
      %vm802 = vcmask 1040384
      %v803 = vsel %vm802, %v732, %v801
      %vm804 = vcmask 1041408
      %v805 = vsel %vm804, %v803, 0.0
      %806 = vst [vmem:[%s187] sm:$0xff] %v805
      %s807 = smul.u32 32, %s15
      %p808 = scmp.lt.s32.totalorder %s807, 63
      %s809 = scalar_select %p808, %s807, 63
      %s810 = smul.addr %s809, 8
      %s811 = scalar_lea.vmem %s2, %s810
      %p812 = scmp.lt.s32.totalorder %s15, 1
      %s813 = scalar_select %p812, %s15, 1
      %s814 = smul.addr %s813, 8
      %s815 = scalar_lea.vmem %s3, %s814
      // Predicated region
      $region29: #{cnnblock_forward.2} parent=27 // pred_check
        %p816 = pneg %p80
      $region30: #{cnnblock_forward.2} parent=27 // pred_check_branch
        %818 = sbr.rel (%p816) target = $region32
      $region31: #{cnnblock_forward.2} parent=27 // pred_region
        %s819 = smul.u32 32, %s15
      $region32: #{cnnblock_forward.2} parent=27 // pred_fallthru
        _
      // Predicated region
      $region33: #{cnnblock_forward.2} parent=27 // pred_check
        %p820 = pneg %p106
      $region34: #{cnnblock_forward.2} parent=27 // pred_check_branch
        %822 = sbr.rel (%p820) target = $region36
      $region35: #{cnnblock_forward.2} parent=27 // pred_region
        _
      $region36: #{cnnblock_forward.2} parent=27 // pred_fallthru
        _
    $region28: #{cnnblock_forward.2} parent=5 // pred_fallthru
      _
    %p823 = scmp.le.s32.totalorder 2, %s10
    // Predicated region
    $region37: #{cnnblock_forward.2} parent=5 // pred_check
      %p824 = pneg %p823
    $region38: #{cnnblock_forward.2} parent=5 // pred_check_branch
      %826 = sbr.rel (%p824) target = $region40
    $region39: #{cnnblock_forward.2} parent=5 // pred_region
      %s827 = ssub.s32 %s10, 2
      // Predicated region
      $region41: #{cnnblock_forward.2} parent=39 // pred_check
        %p828 = pneg %p86
      $region42: #{cnnblock_forward.2} parent=39 // pred_check_branch
        %830 = sbr.rel (%p828) target = $region44
      $region43: #{cnnblock_forward.2} parent=39 // pred_region
        %s831 = smul.u32 32, %s16
        %p832 = scmp.lt.s32.totalorder %s831, 63
        %s833 = scalar_select %p832, %s831, 63
        %s834 = smul.addr %s833, 8
        %s835 = scalar_lea.vmem %s2, %s834
      $region44: #{cnnblock_forward.2} parent=39 // pred_fallthru
        _
      // Predicated region
      $region45: #{cnnblock_forward.2} parent=39 // pred_check
        %p836 = pneg %p112
      $region46: #{cnnblock_forward.2} parent=39 // pred_check_branch
        %838 = sbr.rel (%p836) target = $region48
      $region47: #{cnnblock_forward.2} parent=39 // pred_region
        %p839 = scmp.lt.s32.totalorder %s16, 1
        %s840 = scalar_select %p839, %s16, 1
        %s841 = smul.addr %s840, 8
        %s842 = scalar_lea.vmem %s3, %s841
      $region48: #{cnnblock_forward.2} parent=39 // pred_fallthru
        _
    $region40: #{cnnblock_forward.2} parent=5 // pred_fallthru
      _
  $region6: #{cnnblock_forward.2} parent=0 // loop_footer
    %s14 = sadd.s32 1, %s10
  $region7: #{cnnblock_forward.2} parent=0 // loop_footer_branch
    %9 = sbr.rel target = $region3
  $region8: #{cnnblock_forward.2} parent=0 // loop_exit
    _

</llo_original>
